<compile_context>
chip_gen: v6e
topology: v6e:2x2x1
jax: 0.10.0
libtpu: 0.0.40
codegen_flags: <defaults>
</compile_context>

<pallas_src>
import math

import numpy as np
import jax
import jax.numpy as jnp
from jax.experimental import pallas as pl
from jax.experimental.pallas import tpu as pltpu


def _make_conv_lrelu_kernel(n_phase, Cin, L, tap_offsets, neg_slope):
    """Kernel body for one EqualConv2d + LeakyReLU layer (one batch element / step).

    tap_offsets: list of (phase_index, flat_lane_offset) for the K*K taps, in
    (kh, kw) row-major order — matching the (Cout, K*K*Cin) weight slab columns.
    """

    def kernel(*refs):
        phase_refs = refs[:n_phase]          # each: (1, Cin, FL) flattened phase input
        w_ref = refs[n_phase]                # (Cout, K*K*Cin) dense weight slab
        b_ref = refs[n_phase + 1]            # (Cout, 1)
        o_ref = refs[n_phase + 2]            # (1, Cout, L) lane-dense output block
        col_ref = refs[n_phase + 3]          # (K*K*Cin, L) VMEM im2col scratch

        # Build the im2col slab once per grid step: each tap is one contiguous
        # lane-window of its flattened phase -> a plain full-width VMEM copy
        # (no reshape, no transpose, no strided access).
        for t, (pidx, off) in enumerate(tap_offsets):
            col_ref[t * Cin:(t + 1) * Cin, :] = phase_refs[pidx][0, :, off:off + L]

        # Single big MXU matmul, f32 accumulation.
        acc = jnp.dot(w_ref[...], col_ref[...],
                      preferred_element_type=jnp.float32)
        acc = acc + b_ref[...]                               # bias (lane broadcast)
        acc = jnp.where(acc >= 0.0, acc, neg_slope * acc)    # LeakyReLU(neg_slope)
        o_ref[0] = acc.astype(o_ref.dtype)

    return kernel


def equal_conv2d_lrelu(x, weight, bias, *, stride, padding, neg_slope=0.2):
    """EqualConv2d (equal-lr scaled conv, NCHW tensors) + LeakyReLU via Pallas."""
    N, Cin, H, W = x.shape
    Cout, Cin_w, K, K2 = weight.shape
    assert Cin_w == Cin and K == K2
    s = int(stride)
    assert 1 <= s <= K

    # ---- equal-lr scaling + dense (Cout, K*K*Cin) weight slab -------------------
    scale = math.sqrt(2.0 / (Cin * K * K))
    w_flat = jnp.transpose(weight.astype(jnp.float32) * scale,
                           (0, 2, 3, 1)).reshape(Cout, K * K * Cin)
    b_col = bias.astype(jnp.float32).reshape(Cout, 1)

    # ---- geometry ---------------------------------------------------------------
    Hp, Wp = H + 2 * padding, W + 2 * padding
    Hout = (Hp - K) // s + 1
    Wout = (Wp - K) // s + 1
    q = (K - 1) // s            # max per-phase tap offset (halo)
    P = Wout + q                # common row pitch of all phases (flattened lane dim)
    R = Hout + q                # rows kept per phase
    L = Hout * P                # im2col / output columns (q junk cols per row)

    xp = jnp.pad(x.astype(jnp.float32),
                 ((0, 0), (0, 0), (padding, padding), (padding, padding)))

    # ---- sub-pixel (phase) decomposition + flatten to pitch P --------------------
    # Tap (kh, kw) reads phase (kh % s, kw % s) at unit-stride offset
    # (kh // s, kw // s): the kernel never sees strided / dilated data.
    phases = []
    for a in range(s):
        for b in range(s):
            ph = xp[:, :, a::s, b::s][:, :, :R, :P]
            ph = jnp.pad(ph, ((0, 0), (0, 0),
                              (0, R - ph.shape[2]), (0, P - ph.shape[3])))
            ph = ph.reshape(N, Cin, R * P)
            ph = jnp.pad(ph, ((0, 0), (0, 0), (0, q)))   # tail slack for last tap window
            phases.append(ph)
    FL = R * P + q

    tap_offsets = []
    for kh in range(K):
        for kw in range(K):
            pidx = (kh % s) * s + (kw % s)
            tap_offsets.append((pidx, (kh // s) * P + (kw // s)))

    kernel = _make_conv_lrelu_kernel(s * s, Cin, L, tap_offsets, neg_slope)

    in_specs = [pl.BlockSpec((1, Cin, FL), lambda n: (n, 0, 0)) for _ in range(s * s)]
    in_specs.append(pl.BlockSpec((Cout, K * K * Cin), lambda n: (0, 0)))
    in_specs.append(pl.BlockSpec((Cout, 1), lambda n: (0, 0)))

    out_wide = pl.pallas_call(
        kernel,
        out_shape=jax.ShapeDtypeStruct((N, Cout, L), x.dtype),
        grid=(N,),
        in_specs=in_specs,
        out_specs=pl.BlockSpec((1, Cout, L), lambda n: (n, 0, 0)),
        scratch_shapes=[pltpu.VMEM((K * K * Cin, L), jnp.float32)],
        compiler_params=pltpu.CompilerParams(
            dimension_semantics=("parallel",)),
    )(*phases, w_flat, b_col)

    # Drop the q junk columns per output row, restore NCHW.
    return out_wide.reshape(N, Cout, Hout, P)[:, :, :, :Wout]


def encode_conv_block(x, w1, b1, w2, b2, *, padding=1, neg_slope=0.2):
    """Forward pass of EncodeConvBlock (InstanceNorm calls are dead code -> omitted)."""
    y = equal_conv2d_lrelu(x, w1, b1, stride=1, padding=padding, neg_slope=neg_slope)
    y = equal_conv2d_lrelu(y, w2, b2, stride=2, padding=padding, neg_slope=neg_slope)
    return y


# ------------------------- NumPy reference (for the check) -----------------------
def _ref_equal_conv_lrelu(x, w, b, stride, padding, neg_slope=0.2):
    x = np.asarray(x, np.float64)
    w = np.asarray(w, np.float64)
    b = np.asarray(b, np.float64)
    N, Cin, H, W = x.shape
    Cout, _, K, _ = w.shape
    w = w * math.sqrt(2.0 / (Cin * K * K))            # equal-lr scaling
    Hp, Wp = H + 2 * padding, W + 2 * padding
    xp = np.zeros((N, Cin, Hp, Wp), np.float64)
    xp[:, :, padding:padding + H, padding:padding + W] = x
    Hout = (Hp - K) // stride + 1
    Wout = (Wp - K) // stride + 1
    out = np.zeros((N, Cout, Hout, Wout), np.float64)
    for kh in range(K):
        for kw in range(K):
            patch = xp[:, :, kh:kh + stride * Hout:stride, kw:kw + stride * Wout:stride]
            out += np.einsum('nchw,oc->nohw', patch, w[:, :, kh, kw])
    out += b[None, :, None, None]
    return np.where(out >= 0, out, neg_slope * out).astype(np.float32)


if __name__ == "__main__":
    key = jax.random.PRNGKey(0)
    k1, k2, k3, k4, k5 = jax.random.split(key, 5)

    N, Cin, Cout, H, W = 2, 4, 8, 16, 16
    K, padding = 3, 1

    x = jax.random.normal(k1, (N, Cin, H, W), dtype=jnp.float32)
    w1 = jax.random.normal(k2, (Cout, Cin, K, K), dtype=jnp.float32)
    b1 = 0.1 * jax.random.normal(k3, (Cout,), dtype=jnp.float32)
    w2 = jax.random.normal(k4, (Cout, Cout, K, K), dtype=jnp.float32)
    b2 = 0.1 * jax.random.normal(k5, (Cout,), dtype=jnp.float32)

    out = encode_conv_block(x, w1, b1, w2, b2, padding=padding)
    out = jax.block_until_ready(out)

    # Independent correctness check against the PyTorch module definition.
    y1 = _ref_equal_conv_lrelu(x, w1, b1, 1, padding)
    y2 = _ref_equal_conv_lrelu(y1, w2, b2, 2, padding)
    assert out.shape == y2.shape, (out.shape, y2.shape)
    np.testing.assert_allclose(np.asarray(out), y2, rtol=5e-3, atol=5e-3)

    print("KERNEL_OK")
</pallas_src>

<mosaic_0001>
module attributes {stable_mosaic.version = 11 : i64} {
  func.func @kernel(%arg0: i32, %arg1: memref<1x4x326xf32, #tpu.memory_space<vmem>>, %arg2: memref<8x36xf32, #tpu.memory_space<vmem>>, %arg3: memref<8x1xf32, #tpu.memory_space<vmem>>, %arg4: memref<1x8x288xf32, #tpu.memory_space<vmem>>, %arg5: memref<36x288xf32, #tpu.memory_space<vmem>>) attributes {dimension_semantics = [#tpu.dimension_semantics<parallel>], iteration_bounds = array<i64: 2>, scalar_prefetch = 0 : i64, scratch_operands = 1 : i64, tpu.core_type = #tpu.core_type<tc>, window_params = [{transform_indices = @transform_0, window_bounds = array<i64: 1, 4, 326>}, {pipeline_mode = #tpu.pipeline_mode<synchronous>, transform_indices = @transform_1, window_bounds = array<i64: 8, 36>}, {pipeline_mode = #tpu.pipeline_mode<synchronous>, transform_indices = @transform_2, window_bounds = array<i64: 8, 1>}, {transform_indices = @transform_3, window_bounds = array<i64: 1, 8, 288>}]} {
    %c0 = arith.constant 0 : index
    %c0_0 = arith.constant 0 : index
    %c0_1 = arith.constant 0 : index
    %0 = vector.load %arg1[%c0, %c0_0, %c0_1] : memref<1x4x326xf32, #tpu.memory_space<vmem>>, vector<1x4x288xf32>
    %1 = vector.shape_cast %0 : vector<1x4x288xf32> to vector<4x288xf32>
    %c0_2 = arith.constant 0 : index
    %c0_3 = arith.constant 0 : index
    %2 = vector.load %arg5[%c0_2, %c0_3] : memref<36x288xf32, #tpu.memory_space<vmem>>, vector<4x288xf32>
    tpu.vector_store %arg5[%c0_2, %c0_3], %1 {strides = array<i32>} : memref<36x288xf32, #tpu.memory_space<vmem>>, vector<4x288xf32>,
    %c0_4 = arith.constant 0 : index
    %c0_5 = arith.constant 0 : index
    %c1 = arith.constant 1 : index
    %3 = vector.load %arg1[%c0_4, %c0_5, %c1] : memref<1x4x326xf32, #tpu.memory_space<vmem>>, vector<1x4x288xf32>
    %4 = vector.shape_cast %3 : vector<1x4x288xf32> to vector<4x288xf32>
    %c4 = arith.constant 4 : index
    %c0_6 = arith.constant 0 : index
    %5 = vector.load %arg5[%c4, %c0_6] : memref<36x288xf32, #tpu.memory_space<vmem>>, vector<4x288xf32>
    tpu.vector_store %arg5[%c4, %c0_6], %4 {strides = array<i32>} : memref<36x288xf32, #tpu.memory_space<vmem>>, vector<4x288xf32>,
    %c0_7 = arith.constant 0 : index
    %c0_8 = arith.constant 0 : index
    %c2 = arith.constant 2 : index
    %6 = vector.load %arg1[%c0_7, %c0_8, %c2] : memref<1x4x326xf32, #tpu.memory_space<vmem>>, vector<1x4x288xf32>
    %7 = vector.shape_cast %6 : vector<1x4x288xf32> to vector<4x288xf32>
    %c8 = arith.constant 8 : index
    %c0_9 = arith.constant 0 : index
    %8 = vector.load %arg5[%c8, %c0_9] : memref<36x288xf32, #tpu.memory_space<vmem>>, vector<4x288xf32>
    tpu.vector_store %arg5[%c8, %c0_9], %7 {strides = array<i32>} : memref<36x288xf32, #tpu.memory_space<vmem>>, vector<4x288xf32>,
    %c0_10 = arith.constant 0 : index
    %c0_11 = arith.constant 0 : index
    %c18 = arith.constant 18 : index
    %9 = vector.load %arg1[%c0_10, %c0_11, %c18] : memref<1x4x326xf32, #tpu.memory_space<vmem>>, vector<1x4x288xf32>
    %10 = vector.shape_cast %9 : vector<1x4x288xf32> to vector<4x288xf32>
    %c12 = arith.constant 12 : index
    %c0_12 = arith.constant 0 : index
    %11 = vector.load %arg5[%c12, %c0_12] : memref<36x288xf32, #tpu.memory_space<vmem>>, vector<4x288xf32>
    tpu.vector_store %arg5[%c12, %c0_12], %10 {strides = array<i32>} : memref<36x288xf32, #tpu.memory_space<vmem>>, vector<4x288xf32>,
    %c0_13 = arith.constant 0 : index
    %c0_14 = arith.constant 0 : index
    %c19 = arith.constant 19 : index
    %12 = vector.load %arg1[%c0_13, %c0_14, %c19] : memref<1x4x326xf32, #tpu.memory_space<vmem>>, vector<1x4x288xf32>
    %13 = vector.shape_cast %12 : vector<1x4x288xf32> to vector<4x288xf32>
    %c16 = arith.constant 16 : index
    %c0_15 = arith.constant 0 : index
    %14 = vector.load %arg5[%c16, %c0_15] : memref<36x288xf32, #tpu.memory_space<vmem>>, vector<4x288xf32>
    tpu.vector_store %arg5[%c16, %c0_15], %13 {strides = array<i32>} : memref<36x288xf32, #tpu.memory_space<vmem>>, vector<4x288xf32>,
    %c0_16 = arith.constant 0 : index
    %c0_17 = arith.constant 0 : index
    %c20 = arith.constant 20 : index
    %15 = vector.load %arg1[%c0_16, %c0_17, %c20] : memref<1x4x326xf32, #tpu.memory_space<vmem>>, vector<1x4x288xf32>
    %16 = vector.shape_cast %15 : vector<1x4x288xf32> to vector<4x288xf32>
    %c20_18 = arith.constant 20 : index
    %c0_19 = arith.constant 0 : index
    %17 = vector.load %arg5[%c20_18, %c0_19] : memref<36x288xf32, #tpu.memory_space<vmem>>, vector<4x288xf32>
    tpu.vector_store %arg5[%c20_18, %c0_19], %16 {strides = array<i32>} : memref<36x288xf32, #tpu.memory_space<vmem>>, vector<4x288xf32>,
    %c0_20 = arith.constant 0 : index
    %c0_21 = arith.constant 0 : index
    %c36 = arith.constant 36 : index
    %18 = vector.load %arg1[%c0_20, %c0_21, %c36] : memref<1x4x326xf32, #tpu.memory_space<vmem>>, vector<1x4x288xf32>
    %19 = vector.shape_cast %18 : vector<1x4x288xf32> to vector<4x288xf32>
    %c24 = arith.constant 24 : index
    %c0_22 = arith.constant 0 : index
    %20 = vector.load %arg5[%c24, %c0_22] : memref<36x288xf32, #tpu.memory_space<vmem>>, vector<4x288xf32>
    tpu.vector_store %arg5[%c24, %c0_22], %19 {strides = array<i32>} : memref<36x288xf32, #tpu.memory_space<vmem>>, vector<4x288xf32>,
    %c0_23 = arith.constant 0 : index
    %c0_24 = arith.constant 0 : index
    %c37 = arith.constant 37 : index
    %21 = vector.load %arg1[%c0_23, %c0_24, %c37] : memref<1x4x326xf32, #tpu.memory_space<vmem>>, vector<1x4x288xf32>
    %22 = vector.shape_cast %21 : vector<1x4x288xf32> to vector<4x288xf32>
    %c28 = arith.constant 28 : index
    %c0_25 = arith.constant 0 : index
    %23 = vector.load %arg5[%c28, %c0_25] : memref<36x288xf32, #tpu.memory_space<vmem>>, vector<4x288xf32>
    tpu.vector_store %arg5[%c28, %c0_25], %22 {strides = array<i32>} : memref<36x288xf32, #tpu.memory_space<vmem>>, vector<4x288xf32>,
    %c0_26 = arith.constant 0 : index
    %c0_27 = arith.constant 0 : index
    %c38 = arith.constant 38 : index
    %24 = vector.load %arg1[%c0_26, %c0_27, %c38] : memref<1x4x326xf32, #tpu.memory_space<vmem>>, vector<1x4x288xf32>
    %25 = vector.shape_cast %24 : vector<1x4x288xf32> to vector<4x288xf32>
    %c32 = arith.constant 32 : index
    %c0_28 = arith.constant 0 : index
    %26 = vector.load %arg5[%c32, %c0_28] : memref<36x288xf32, #tpu.memory_space<vmem>>, vector<4x288xf32>
    tpu.vector_store %arg5[%c32, %c0_28], %25 {strides = array<i32>} : memref<36x288xf32, #tpu.memory_space<vmem>>, vector<4x288xf32>,
    %c0_29 = arith.constant 0 : index
    %c0_30 = arith.constant 0 : index
    %27 = vector.load %arg2[%c0_29, %c0_30] : memref<8x36xf32, #tpu.memory_space<vmem>>, vector<8x36xf32>
    %c0_31 = arith.constant 0 : index
    %c0_32 = arith.constant 0 : index
    %28 = vector.load %arg5[%c0_31, %c0_32] : memref<36x288xf32, #tpu.memory_space<vmem>>, vector<36x288xf32>
    %cst = arith.constant dense<0.000000e+00> : vector<8x288xf32>
    %29 = tpu.matmul %27, %28, %cst {dimension_numbers = #tpu.dot_dimension_numbers<[1], [0], [0], [1], [0, 0, 1, 1], [], []>} : vector<8x36xf32>, vector<36x288xf32>, vector<8x288xf32> -> vector<8x288xf32>
    %c0_33 = arith.constant 0 : index
    %c0_34 = arith.constant 0 : index
    %30 = vector.load %arg3[%c0_33, %c0_34] : memref<8x1xf32, #tpu.memory_space<vmem>>, vector<8x1xf32>
    %31 = vector.broadcast %30 : vector<8x1xf32> to vector<8x288xf32>
    %32 = arith.addf %29, %31 : vector<8x288xf32>
    %cst_35 = arith.constant 0.000000e+00 : f32
    %33 = vector.broadcast %cst_35 : f32 to vector<8x288xf32>
    %34 = arith.cmpf oge, %32, %33 : vector<8x288xf32>
    %cst_36 = arith.constant 2.000000e-01 : f32
    %35 = vector.broadcast %cst_36 : f32 to vector<8x288xf32>
    %36 = arith.mulf %35, %32 : vector<8x288xf32>
    %37 = arith.select %34, %32, %36 : vector<8x288xi1>, vector<8x288xf32>
    %c0_37 = arith.constant 0 : index
    %c0_38 = arith.constant 0 : index
    %c0_39 = arith.constant 0 : index
    %38 = vector.load %arg4[%c0_37, %c0_38, %c0_39] : memref<1x8x288xf32, #tpu.memory_space<vmem>>, vector<1x8x288xf32>
    %39 = vector.shape_cast %38 : vector<1x8x288xf32> to vector<8x288xf32>
    %40 = vector.shape_cast %37 : vector<8x288xf32> to vector<1x8x288xf32>
    tpu.vector_store %arg4[%c0_37, %c0_38, %c0_39], %40 {strides = array<i32>} : memref<1x8x288xf32, #tpu.memory_space<vmem>>, vector<1x8x288xf32>,
    return
  }
  func.func @transform_0(%arg0: i32) -> (i32, i32, i32) {
    %c0_i32 = arith.constant 0 : i32
    %c0_i32_0 = arith.constant 0 : i32
    %c0_i32_1 = arith.constant 0 : i32
    return %arg0, %c0_i32, %c0_i32_0 : i32, i32, i32
  }
  func.func @transform_1(%arg0: i32) -> (i32, i32) {
    %c0_i32 = arith.constant 0 : i32
    %c0_i32_0 = arith.constant 0 : i32
    %c0_i32_1 = arith.constant 0 : i32
    return %c0_i32, %c0_i32_0 : i32, i32
  }
  func.func @transform_2(%arg0: i32) -> (i32, i32) {
    %c0_i32 = arith.constant 0 : i32
    %c0_i32_0 = arith.constant 0 : i32
    %c0_i32_1 = arith.constant 0 : i32
    return %c0_i32, %c0_i32_0 : i32, i32
  }
  func.func @transform_3(%arg0: i32) -> (i32, i32, i32) {
    %c0_i32 = arith.constant 0 : i32
    %c0_i32_0 = arith.constant 0 : i32
    %c0_i32_1 = arith.constant 0 : i32
    return %arg0, %c0_i32, %c0_i32_0 : i32, i32, i32
  }
}

</mosaic_0001>

<llo_original>
// kernel: tpu_custom_call.1
$region0: #{tpu_custom_call.1}
  #allocation0 [shape = 'u32[]', space=smem, size = 0x4, offset = 0x4, fixed_abs, tag = 'smem constant byte address 0x4 - core index']
  #allocation1 [shape = 'u32[144,128]{1,0:T(1,128)}', space=vmem, size = 0x12000, scoped, tag = 'internal scratch']
  #allocation2 [shape = 'f32[36,288]{1,0:T(8,128)}', space=vmem, size = 0xf000, scoped, tag = 'scratch operand']
  %s0 = inlined_call_operand.hbm [shape: f32[2,4,326], index: 0, kind: input, shape index: {}]
  %s1 = inlined_call_operand.vmem [shape: f32[8,36], index: 1, kind: input, shape index: {}]
  %s2 = inlined_call_operand.vmem [shape: f32[8,1], index: 2, kind: input, shape index: {}]
  %s3 = inlined_call_operand.hbm [shape: f32[2,8,288], index: 3, kind: output, shape index: {}]
  %s4 = sld [smem:[#allocation0]]
  $region49: #{tpu_custom_call.1} parent=0
    _
  %s6 = ssub.s32 1, %s4
  %s7 = scalar_select 0, %s6, %s4
  $region1: #{tpu_custom_call.1} parent=0
    #allocation3 [shape = 'u8[12288]{0}', space=vmem, size = 0x3000, scoped, tag = 'input window, operand 0']
    #allocation4 [shape = 's32[2]{0}', space=sflag, size = 0x8, scoped, tag = 'scoped memory for tpu_custom_call.1']
    #allocation5 [shape = 's32[2]{0}', space=sflag, size = 0x8, scoped, tag = 'scoped memory for tpu_custom_call.1']
    #allocation6 [shape = 'u8[24576]{0}', space=vmem, size = 0x6000, scoped, tag = 'output window, operand 0']
    %8 = vsyncpa [#allocation4], 0
    %s9 = scalar_lea.sflag [#allocation4], 1
    %10 = vsyncpa %s9, 0
    %11 = vsyncpa [#allocation5], 0
    %s12 = scalar_lea.sflag [#allocation5], 1
    %13 = vsyncpa %s12, 0
    loop: start=0, step=1, limit=4
    $region2: #{tpu_custom_call.1} parent=1 // loop_pre_header
      _
    $region3: #{tpu_custom_call.1} parent=1 // loop_header
      %s15 = sphi 0, %s19
      %p16 = scmp.ge.s32.totalorder %s15, 4
      %s25 = sphi 0, %s27
      %s28 = sphi 0, %s25
      %s29 = sphi 0, %s28
      %s45 = sphi 0, %s29
      %s49 = sphi 0, %s49
      %s51 = sphi 0, %s49
      %s52 = sphi 0, %s51
      %s66 = sphi 0, %s52
      %s70 = sphi 0, %s70
      %s72 = sphi 0, %s70
      %s73 = sphi 0, %s72
      %s87 = sphi 0, %s73
      %s93 = sphi 0, %s95
      %s96 = sphi 0, %s93
      %s97 = sphi 0, %s96
      %s113 = sphi 0, %s97
    $region4: #{tpu_custom_call.1} parent=1 // loop_header_branch
      %18 = sbr.rel (%p16) target = $region8
    $region5: #{tpu_custom_call.1} parent=1 // loop_body
      %s20 = ssub.s32 %s15, 1
      %s21 = ssub.s32 %s15, 2
      %s22 = sadd.s32 %s15, 1
      %s23 = ssub.s32 %s15, %s22
      %p24 = scmp.eq.s32.totalorder %s23, 0
      %s26 = sadd.s32 %s25, 1
      %s27 = scalar_select %p24, %s25, %s26
      %p30 = pneg %p24
      %p31 = scmp.eq.s32.totalorder %s15, 1
      %p32 = por %p30, %p31
      %p33 = scmp.ne.s32.totalorder %s25, %s28
      %p34 = scmp.eq.s32.totalorder %s15, 0
      %p35 = por %p33, %p34
      %p36 = scmp.ne.s32.totalorder %s25, %s28
      %p37 = scmp.eq.s32.totalorder %s20, 1
      %p38 = por %p36, %p37
      %p39 = scmp.ne.s32.totalorder %s28, %s29
      %p40 = scmp.eq.s32.totalorder %s20, 0
      %p41 = por %p39, %p40
      %p42 = scmp.ne.s32.totalorder %s28, %s29
      %p43 = scmp.eq.s32.totalorder %s21, 1
      %p44 = por %p42, %p43
      %p46 = scmp.ne.s32.totalorder %s29, %s45
      %p47 = scmp.eq.s32.totalorder %s21, 0
      %p48 = por %p46, %p47
      %s50 = sadd.s32 %s49, 1
      %p53 = scmp.eq.s32.totalorder %s15, 1
      %p54 = scmp.ne.s32.totalorder %s49, %s51
      %p55 = scmp.eq.s32.totalorder %s15, 0
      %p56 = por %p54, %p55
      %p57 = scmp.ne.s32.totalorder %s49, %s51
      %p58 = scmp.eq.s32.totalorder %s20, 1
      %p59 = por %p57, %p58
      %p60 = scmp.ne.s32.totalorder %s51, %s52
      %p61 = scmp.eq.s32.totalorder %s20, 0
      %p62 = por %p60, %p61
      %p63 = scmp.ne.s32.totalorder %s51, %s52
      %p64 = scmp.eq.s32.totalorder %s21, 1
      %p65 = por %p63, %p64
      %p67 = scmp.ne.s32.totalorder %s52, %s66
      %p68 = scmp.eq.s32.totalorder %s21, 0
      %p69 = por %p67, %p68
      %s71 = sadd.s32 %s70, 1
      %p74 = scmp.eq.s32.totalorder %s15, 1
      %p75 = scmp.ne.s32.totalorder %s70, %s72
      %p76 = scmp.eq.s32.totalorder %s15, 0
      %p77 = por %p75, %p76
      %p78 = scmp.ne.s32.totalorder %s70, %s72
      %p79 = scmp.eq.s32.totalorder %s20, 1
      %p80 = por %p78, %p79
      %p81 = scmp.ne.s32.totalorder %s72, %s73
      %p82 = scmp.eq.s32.totalorder %s20, 0
      %p83 = por %p81, %p82
      %p84 = scmp.ne.s32.totalorder %s72, %s73
      %p85 = scmp.eq.s32.totalorder %s21, 1
      %p86 = por %p84, %p85
      %p88 = scmp.ne.s32.totalorder %s73, %s87
      %p89 = scmp.eq.s32.totalorder %s21, 0
      %p90 = por %p88, %p89
      %s91 = ssub.s32 %s15, %s22
      %p92 = scmp.eq.s32.totalorder %s91, 0
      %s94 = sadd.s32 %s93, 1
      %s95 = scalar_select %p92, %s93, %s94
      %p98 = pneg %p92
      %p99 = scmp.eq.s32.totalorder %s15, 1
      %p100 = por %p98, %p99
      %p101 = scmp.ne.s32.totalorder %s93, %s96
      %p102 = scmp.eq.s32.totalorder %s15, 0
      %p103 = por %p101, %p102
      %p104 = scmp.ne.s32.totalorder %s93, %s96
      %p105 = scmp.eq.s32.totalorder %s20, 1
      %p106 = por %p104, %p105
      %p107 = scmp.ne.s32.totalorder %s96, %s97
      %p108 = scmp.eq.s32.totalorder %s20, 0
      %p109 = por %p107, %p108
      %p110 = scmp.ne.s32.totalorder %s96, %s97
      %p111 = scmp.eq.s32.totalorder %s21, 1
      %p112 = por %p110, %p111
      %p114 = scmp.ne.s32.totalorder %s97, %s113
      %p115 = scmp.eq.s32.totalorder %s21, 0
      %p116 = por %p114, %p115
      %p117 = scmp.le.s32.totalorder 1, %s15
      %p118 = scmp.lt.s32.totalorder %s15, 3
      %p119 = pnand %p117, %p118
      %p120 = pneg %p119
      // Predicated region
      $region9: #{tpu_custom_call.1} parent=5 // pred_check
        _
      $region10: #{tpu_custom_call.1} parent=5 // pred_check_branch
        %122 = sbr.rel (%p119) target = $region12
      $region11: #{tpu_custom_call.1} parent=5 // pred_region
        %s123 = ssub.s32 %s15, 1
        // Predicated region
        $region13: #{tpu_custom_call.1} parent=11 // pred_check
          %p124 = pneg %p62
        $region14: #{tpu_custom_call.1} parent=11 // pred_check_branch
          %126 = sbr.rel (%p124) target = $region16
        $region15: #{tpu_custom_call.1} parent=11 // pred_region
          _
        $region16: #{tpu_custom_call.1} parent=11 // pred_fallthru
          _
        // Predicated region
        $region17: #{tpu_custom_call.1} parent=11 // pred_check
          %p127 = pneg %p83
        $region18: #{tpu_custom_call.1} parent=11 // pred_check_branch
          %129 = sbr.rel (%p127) target = $region20
        $region19: #{tpu_custom_call.1} parent=11 // pred_region
          _
        $region20: #{tpu_custom_call.1} parent=11 // pred_fallthru
          _
      $region12: #{tpu_custom_call.1} parent=5 // pred_fallthru
        _
      %p130 = scmp.lt.s32.totalorder %s15, 2
      // Predicated region
      $region21: #{tpu_custom_call.1} parent=5 // pred_check
        %p131 = pneg %p130
      $region22: #{tpu_custom_call.1} parent=5 // pred_check_branch
        %133 = sbr.rel (%p131) target = $region24
      $region23: #{tpu_custom_call.1} parent=5 // pred_region
        // Predicated region
        $region25: #{tpu_custom_call.1} parent=23 // pred_check
          %p134 = pneg %p35
        $region26: #{tpu_custom_call.1} parent=23 // pred_check_branch
          %136 = sbr.rel (%p134) target = $region28
        $region27: #{tpu_custom_call.1} parent=23 // pred_region
          %s137 = sand.u32 %s25, 1
          %s138 = scalar_lea.sflag [#allocation4], %s137
          %s139 = sand.u32 %s25, 1
          %s140 = smul.addr %s139, 12
          %s141 = scalar_lea.vmem [#allocation3], %s140
          %s143 = ssub.s32 192, 192
          %144 = vsyncadd %s138, %s143
          %s145 = smul.addr %s15, 3
          %s146 = smul.addr %s145, 64
          %s147 = scalar_lea.hbm %s0, %s146
          %s149 = sshll.u32 %s141, 4
          %s150 = int_to_ptr.vmem [resolvable:$true] %s149
          %152 = dma.hbm_to_vmem [thread:$0]  %s147, 192, %s150, %s138
        $region28: #{tpu_custom_call.1} parent=23 // pred_fallthru
          _
      $region24: #{tpu_custom_call.1} parent=5 // pred_fallthru
        _
      %p153 = scmp.le.s32.totalorder 1, %s15
      %p154 = scmp.lt.s32.totalorder %s15, 3
      %p155 = pnand %p153, %p154
      %p156 = pneg %p155
      // Predicated region
      $region29: #{tpu_custom_call.1} parent=5 // pred_check
        _
      $region30: #{tpu_custom_call.1} parent=5 // pred_check_branch
        %158 = sbr.rel (%p155) target = $region32
      $region31: #{tpu_custom_call.1} parent=5 // pred_region
        %s159 = ssub.s32 %s15, 1
        %s160 = sand.u32 %s28, 1
        %s161 = scalar_lea.sflag [#allocation4], %s160
        %s162 = sand.u32 %s28, 1
        %s163 = smul.addr %s162, 12
        %s164 = scalar_lea.vmem [#allocation3], %s163
        // Predicated region
        $region33: #{tpu_custom_call.1} parent=31 // pred_check
          %p165 = pneg %p41
        $region34: #{tpu_custom_call.1} parent=31 // pred_check_branch
          %167 = sbr.rel (%p165) target = $region36
        $region35: #{tpu_custom_call.1} parent=31 // pred_region
          %168 = dma.done %s161, 192
        $region36: #{tpu_custom_call.1} parent=31 // pred_fallthru
          _
        %s169 = sand.u32 %s28, 1
        %s170 = scalar_lea.sflag [#allocation4], %s169
        %s171 = sand.u32 %s28, 1
        %s172 = smul.addr %s171, 12
        %s173 = scalar_lea.vmem [#allocation3], %s172
        %p174 = pneg %p41
        %p175 = pneg %p38
        %p176 = pneg %p62
        %p177 = pneg %p59
        %p178 = pneg %p83
        %p179 = pneg %p80
        %p180 = pneg %p109
        %p181 = pneg %p106
        %s182 = sand.u32 %s96, 1
        %s183 = scalar_lea.sflag [#allocation5], %s182
        %s184 = sand.u32 %s96, 1
        %s185 = smul.addr %s184, 24
        %s186 = scalar_lea.vmem [#allocation6], %s185
        %v187 = vld [vmem:[%s164] sm:$0xff]
        %v188 = vld [vmem:[%s164 + $0x8] sm:$0xf]
        %v190 = vcombine.high %v187, %v187
        %192 = vst [vmem:[#allocation2] sm:$0xf] %v187
        %193 = vst [vmem:[#allocation2 + $0x8] sm:$0xf] %v190
        %vm194 = vcmask 257024
        %195 = vst.msk [vmem:[#allocation2 + $0x10] sm:$0xf] %vm194, %v188
        %v196 = vld [vmem:[%s164] sm:$0xff]
        %v197 = vld [vmem:[%s164 + $0x8] sm:$0xf]
        %v200 = vcombine.low %v196, %v196
        %v201 = vcombine.low %v197, %v197
        %202 = vrot.lane.b32.xlu0 %v200, 127
        %v203 = vpop.permute.xlu0 %202
        %204 = vrot.lane.b32.xlu0 %v196, 127
        %v205 = vpop.permute.xlu0 %204
        %206 = vrot.lane.b32.xlu0 %v201, 127
        %v207 = vpop.permute.xlu0 %206
        %vm208 = vcmask 1039360
        %v209 = vsel %vm208, %v203, %v205
        %v210 = vsel %vm208, %v205, %v207
        %214 = vst [vmem:[#allocation2] sm:$0xf0] %v209
        %215 = vst [vmem:[#allocation2 + $0x8] sm:$0xf0] %v210
        %vm216 = vcmask 261124
        %217 = vst.msk [vmem:[#allocation2 + $0x10] sm:$0xf0] %vm216, %v207
        %v218 = vld [vmem:[%s164] sm:$0xff]
        %v219 = vld [vmem:[%s164 + $0x8] sm:$0xf]
        %v222 = vcombine.high %v218, %v218
        %223 = vrot.lane.b32.xlu0 %v218, 126
        %v224 = vpop.permute.xlu0 %223
        %225 = vrot.lane.b32.xlu0 %v222, 126
        %v226 = vpop.permute.xlu0 %225
        %227 = vrot.lane.b32.xlu0 %v219, 126
        %v228 = vpop.permute.xlu0 %227
        %vm229 = vcmask 1031168
        %v230 = vsel %vm229, %v224, %v226
        %v231 = vsel %vm229, %v226, %v228
        %235 = vst [vmem:[#allocation2 + $0x18] sm:$0xf] %v230
        %236 = vst [vmem:[#allocation2 + $0x20] sm:$0xf] %v231
        %237 = vst.msk [vmem:[#allocation2 + $0x28] sm:$0xf] %vm194, %v228
        %v238 = vld [vmem:[%s164] sm:$0xff]
        %v239 = vld [vmem:[%s164 + $0x8] sm:$0xf]
        %v242 = vcombine.low %v238, %v238
        %v243 = vcombine.low %v239, %v239
        %244 = vrot.lane.b32.xlu0 %v242, 110
        %v245 = vpop.permute.xlu0 %244
        %246 = vrot.lane.b32.xlu0 %v238, 110
        %v247 = vpop.permute.xlu0 %246
        %248 = vrot.lane.b32.xlu0 %v243, 110
        %v249 = vpop.permute.xlu0 %248
        %vm250 = vcmask 900096
        %v251 = vsel %vm250, %v245, %v247
        %v252 = vsel %vm250, %v247, %v249
        %256 = vst [vmem:[#allocation2 + $0x18] sm:$0xf0] %v251
        %257 = vst [vmem:[#allocation2 + $0x20] sm:$0xf0] %v252
        %258 = vst.msk [vmem:[#allocation2 + $0x28] sm:$0xf0] %vm216, %v249
        %v259 = vld [vmem:[%s164] sm:$0xff]
        %v260 = vld [vmem:[%s164 + $0x8] sm:$0xf]
        %v263 = vcombine.high %v259, %v259
        %264 = vrot.lane.b32.xlu0 %v259, 109
        %v265 = vpop.permute.xlu0 %264
        %266 = vrot.lane.b32.xlu0 %v263, 109
        %v267 = vpop.permute.xlu0 %266
        %268 = vrot.lane.b32.xlu0 %v260, 109
        %v269 = vpop.permute.xlu0 %268
        %vm270 = vcmask 891904
        %v271 = vsel %vm270, %v265, %v267
        %v272 = vsel %vm270, %v267, %v269
        %276 = vst [vmem:[#allocation2 + $0x30] sm:$0xf] %v271
        %277 = vst [vmem:[#allocation2 + $0x38] sm:$0xf] %v272
        %278 = vst.msk [vmem:[#allocation2 + $0x40] sm:$0xf] %vm194, %v269
        %v279 = vld [vmem:[%s164] sm:$0xff]
        %v280 = vld [vmem:[%s164 + $0x8] sm:$0xf]
        %v283 = vcombine.low %v279, %v279
        %v284 = vcombine.low %v280, %v280
        %285 = vrot.lane.b32.xlu0 %v283, 108
        %v286 = vpop.permute.xlu0 %285
        %287 = vrot.lane.b32.xlu0 %v279, 108
        %v288 = vpop.permute.xlu0 %287
        %289 = vrot.lane.b32.xlu0 %v284, 108
        %v290 = vpop.permute.xlu0 %289
        %vm291 = vcmask 883712
        %v292 = vsel %vm291, %v286, %v288
        %v293 = vsel %vm291, %v288, %v290
        %297 = vst [vmem:[#allocation2 + $0x30] sm:$0xf0] %v292
        %298 = vst [vmem:[#allocation2 + $0x38] sm:$0xf0] %v293
        %299 = vst.msk [vmem:[#allocation2 + $0x40] sm:$0xf0] %vm216, %v290
        %v300 = vld [vmem:[%s164] sm:$0xff]
        %v301 = vld [vmem:[%s164 + $0x8] sm:$0xf]
        %v304 = vcombine.high %v300, %v300
        %305 = vrot.lane.b32.xlu0 %v300, 92
        %v306 = vpop.permute.xlu0 %305
        %307 = vrot.lane.b32.xlu0 %v304, 92
        %v308 = vpop.permute.xlu0 %307
        %309 = vrot.lane.b32.xlu0 %v301, 92
        %v310 = vpop.permute.xlu0 %309
        %vm311 = vcmask 752640
        %v312 = vsel %vm311, %v306, %v308
        %v313 = vsel %vm311, %v308, %v310
        %317 = vst [vmem:[#allocation2 + $0x48] sm:$0xf] %v312
        %318 = vst [vmem:[#allocation2 + $0x50] sm:$0xf] %v313
        %319 = vst.msk [vmem:[#allocation2 + $0x58] sm:$0xf] %vm194, %v310
        %v320 = vld [vmem:[%s164] sm:$0xff]
        %v321 = vld [vmem:[%s164 + $0x8] sm:$0xf]
        %v324 = vcombine.low %v320, %v320
        %v325 = vcombine.low %v321, %v321
        %326 = vrot.lane.b32.xlu0 %v324, 91
        %v327 = vpop.permute.xlu0 %326
        %328 = vrot.lane.b32.xlu0 %v320, 91
        %v329 = vpop.permute.xlu0 %328
        %330 = vrot.lane.b32.xlu0 %v325, 91
        %v331 = vpop.permute.xlu0 %330
        %vm332 = vcmask 744448
        %v333 = vsel %vm332, %v327, %v329
        %v334 = vsel %vm332, %v329, %v331
        %338 = vst [vmem:[#allocation2 + $0x48] sm:$0xf0] %v333
        %339 = vst [vmem:[#allocation2 + $0x50] sm:$0xf0] %v334
        %340 = vst.msk [vmem:[#allocation2 + $0x58] sm:$0xf0] %vm216, %v331
        %v341 = vld [vmem:[%s164] sm:$0xff]
        %v342 = vld [vmem:[%s164 + $0x8] sm:$0xf]
        %v345 = vcombine.high %v341, %v341
        %346 = vrot.lane.b32.xlu0 %v341, 90
        %v347 = vpop.permute.xlu0 %346
        %348 = vrot.lane.b32.xlu0 %v345, 90
        %v349 = vpop.permute.xlu0 %348
        %350 = vrot.lane.b32.xlu0 %v342, 90
        %v351 = vpop.permute.xlu0 %350
        %vm352 = vcmask 736256
        %v353 = vsel %vm352, %v347, %v349
        %v354 = vsel %vm352, %v349, %v351
        %358 = vst [vmem:[#allocation2 + $0x60] sm:$0xf] %v353
        %359 = vst [vmem:[#allocation2 + $0x68] sm:$0xf] %v354
        %360 = vst.msk [vmem:[#allocation2 + $0x70] sm:$0xf] %vm194, %v351
        %v361 = vld [vmem:[%s1] sm:$0xff]
        %v362 = vld [vmem:[#allocation2] sm:$0xff]
        %v363 = vld [vmem:[#allocation2 + $0x8] sm:$0xff]
        %v364 = vld [vmem:[#allocation2 + $0x10] sm:$0xff]
        %v365 = vld [vmem:[#allocation2 + $0x18] sm:$0xff]
        %v366 = vld [vmem:[#allocation2 + $0x20] sm:$0xff]
        %v367 = vld [vmem:[#allocation2 + $0x28] sm:$0xff]
        %v368 = vld [vmem:[#allocation2 + $0x30] sm:$0xff]
        %v369 = vld [vmem:[#allocation2 + $0x38] sm:$0xff]
        %v370 = vld [vmem:[#allocation2 + $0x40] sm:$0xff]
        %v371 = vld [vmem:[#allocation2 + $0x48] sm:$0xff]
        %v372 = vld [vmem:[#allocation2 + $0x50] sm:$0xff]
        %v373 = vld [vmem:[#allocation2 + $0x58] sm:$0xff]
        %v374 = vld [vmem:[#allocation2 + $0x60] sm:$0xf]
        %v375 = vld [vmem:[#allocation2 + $0x68] sm:$0xf]
        %v376 = vld [vmem:[#allocation2 + $0x70] sm:$0xf]
        %v377 = vld [vmem:[%s2] sm:$0xff]
        %379 = vset.pattern.permute.xlu0 0
        %380 = vperm.xlu0 %379, %v377
        %v381 = vpop.permute.xlu0 %380
        %vm383 = vcmask 293888
        %v385 = vsel %vm383, %v361, 0
        %vm387 = vcmask 1043456
        %v389 = vsel %vm387, %v374, 0
        %v392 = vsel %vm387, %v375, 0
        %v395 = vsel %vm387, %v376, 0
        %397 = vmatprep.subr.mxu0 0.0
        %398 = vmatpush1.msra.mxu0 0.0
        %399 = vmatprep.subr.mxu0 0.0
        %400 = vmatpush1.msra.mxu0 0.0
        %401 = vmatprep.subr.mxu0 0.0
        %402 = vmatpush1.msra.mxu0 0.0
        %403 = vmatprep.subr.mxu0 0.0
        %404 = vmatpush1.msra.mxu0 0.0
        %405 = vmatprep.subr.mxu0 0.0
        %406 = vmatpush1.msra.mxu0 0.0
        %407 = vmatprep.subr.mxu0 0.0
        %408 = vmatpush1.msra.mxu0 0.0
        %409 = vmatprep.subr.mxu0 0.0
        %410 = vmatpush1.msra.mxu0 0.0
        %411 = vmatprep.subr.mxu0 0.0
        %412 = vmatpush1.msra.mxu0 0.0
        %413 = vmatprep.subr.mxu0 0.0
        %414 = vmatpush1.msra.mxu0 0.0
        %415 = vmatprep.subr.mxu0 0.0
        %416 = vmatpush1.msra.mxu0 0.0
        %417 = vmatprep.subr.mxu0 0.0
        %418 = vmatpush1.msra.mxu0 0.0
        %419 = vmatprep.subr.mxu0 %v392
        %420 = vmatpush1.msra.mxu0 %v389
        %421 = vmatprep.subr.mxu0 %v372
        %422 = vmatpush1.msra.mxu0 %v371
        %423 = vmatprep.subr.mxu0 %v369
        %424 = vmatpush1.msra.mxu0 %v368
        %425 = vmatprep.subr.mxu0 %v366
        %426 = vmatpush1.msra.mxu0 %v365
        %427 = vmatprep.subr.mxu0 %v363
        %428 = vmatpush1.msra.mxu0 %v362
        %429 = vmatprep.subr.mxu0 0.0
        %430 = vmatpush2.msra.mxu0 0.0
        %431 = vmatprep.subr.mxu0 0.0
        %432 = vmatpush2.msra.mxu0 0.0
        %433 = vmatprep.subr.mxu0 0.0
        %434 = vmatpush2.msra.mxu0 0.0
        %435 = vmatprep.subr.mxu0 0.0
        %436 = vmatpush2.msra.mxu0 0.0
        %437 = vmatprep.subr.mxu0 0.0
        %438 = vmatpush2.msra.mxu0 0.0
        %439 = vmatprep.subr.mxu0 0.0
        %440 = vmatpush2.msra.mxu0 0.0
        %441 = vmatprep.subr.mxu0 0.0
        %442 = vmatpush2.msra.mxu0 0.0
        %443 = vmatprep.subr.mxu0 0.0
        %444 = vmatpush2.msra.mxu0 0.0
        %445 = vmatprep.subr.mxu0 0.0
        %446 = vmatpush2.msra.mxu0 0.0
        %447 = vmatprep.subr.mxu0 0.0
        %448 = vmatpush2.msra.mxu0 0.0
        %449 = vmatprep.subr.mxu0 0.0
        %450 = vmatpush2.msra.mxu0 0.0
        %451 = vmatprep.subr.mxu0 0.0
        %452 = vmatpush2.msra.mxu0 0.0
        %453 = vmatprep.subr.mxu0 0.0
        %454 = vmatpush2.msra.mxu0 0.0
        %455 = vmatprep.subr.mxu0 0.0
        %456 = vmatpush2.msra.mxu0 0.0
        %457 = vmatprep.subr.mxu0 0.0
        %458 = vmatpush2.msra.mxu0 0.0
        %459 = vmatprep.subr.mxu0 0.0
        %460 = vmatpush2.msra.mxu0 0.0
        %461 = vmatprep.mubr.f32.mxu0 0.0
        %462 = vmatmul.mubr.f32.gmra.mxu0 %v385
        %v463 = vpop.f32.mrf.mxu0
        %v464 = vadd.f32 %v381, %v463
        %v465 = vpop.f32.mrf.mxu0
        %v466 = vadd.f32 %v381, %v465
        %467 = vdwg.mxu0
        %468 = vmatprep.subr.mxu0 0.0
        %469 = vmatpush1.msra.mxu0 0.0
        %470 = vmatprep.subr.mxu0 0.0
        %471 = vmatpush1.msra.mxu0 0.0
        %472 = vmatprep.subr.mxu0 0.0
        %473 = vmatpush1.msra.mxu0 0.0
        %474 = vmatprep.subr.mxu0 0.0
        %475 = vmatpush1.msra.mxu0 0.0
        %476 = vmatprep.subr.mxu0 0.0
        %477 = vmatpush1.msra.mxu0 0.0
        %478 = vmatprep.subr.mxu0 0.0
        %479 = vmatpush1.msra.mxu0 0.0
        %480 = vmatprep.subr.mxu0 0.0
        %481 = vmatpush1.msra.mxu0 0.0
        %482 = vmatprep.subr.mxu0 0.0
        %483 = vmatpush1.msra.mxu0 0.0
        %484 = vmatprep.subr.mxu0 0.0
        %485 = vmatpush1.msra.mxu0 0.0
        %486 = vmatprep.subr.mxu0 0.0
        %487 = vmatpush1.msra.mxu0 0.0
        %488 = vmatprep.subr.mxu0 0.0
        %489 = vmatpush1.msra.mxu0 0.0
        %490 = vmatprep.subr.mxu0 0.0
        %491 = vmatpush1.msra.mxu0 %v395
        %492 = vmatprep.subr.mxu0 0.0
        %493 = vmatpush1.msra.mxu0 %v373
        %494 = vmatprep.subr.mxu0 0.0
        %495 = vmatpush1.msra.mxu0 %v370
        %496 = vmatprep.subr.mxu0 0.0
        %497 = vmatpush1.msra.mxu0 %v367
        %498 = vmatprep.subr.mxu0 0.0
        %499 = vmatpush1.msra.mxu0 %v364
        %500 = vmatprep.subr.mxu0 0.0
        %501 = vmatpush2.msra.mxu0 0.0
        %502 = vmatprep.subr.mxu0 0.0
        %503 = vmatpush2.msra.mxu0 0.0
        %504 = vmatprep.subr.mxu0 0.0
        %505 = vmatpush2.msra.mxu0 0.0
        %506 = vmatprep.subr.mxu0 0.0
        %507 = vmatpush2.msra.mxu0 0.0
        %508 = vmatprep.subr.mxu0 0.0
        %509 = vmatpush2.msra.mxu0 0.0
        %510 = vmatprep.subr.mxu0 0.0
        %511 = vmatpush2.msra.mxu0 0.0
        %512 = vmatprep.subr.mxu0 0.0
        %513 = vmatpush2.msra.mxu0 0.0
        %514 = vmatprep.subr.mxu0 0.0
        %515 = vmatpush2.msra.mxu0 0.0
        %516 = vmatprep.subr.mxu0 0.0
        %517 = vmatpush2.msra.mxu0 0.0
        %518 = vmatprep.subr.mxu0 0.0
        %519 = vmatpush2.msra.mxu0 0.0
        %520 = vmatprep.subr.mxu0 0.0
        %521 = vmatpush2.msra.mxu0 0.0
        %522 = vmatprep.subr.mxu0 0.0
        %523 = vmatpush2.msra.mxu0 0.0
        %524 = vmatprep.subr.mxu0 0.0
        %525 = vmatpush2.msra.mxu0 0.0
        %526 = vmatprep.subr.mxu0 0.0
        %527 = vmatpush2.msra.mxu0 0.0
        %528 = vmatprep.subr.mxu0 0.0
        %529 = vmatpush2.msra.mxu0 0.0
        %530 = vmatprep.subr.mxu0 0.0
        %531 = vmatpush2.msra.mxu0 0.0
        %532 = vmatprep.mubr.f32.mxu0 0.0
        %533 = vmatmul.mubr.f32.gmra.mxu0 %v385
        %v534 = vpop.f32.mrf.mxu0
        %v535 = vadd.f32 %v381, %v534
        %v536 = vpop.f32.mrf.mxu0
        %537 = vdwg.mxu0
        %vm538 = vcmp.ge.f32.partialorder %v464, 0.0
        %vm539 = vcmp.ge.f32.partialorder %v466, 0.0
        %vm540 = vcmp.ge.f32.partialorder %v535, 0.0
        %v541 = vmul.f32 %v464, 0.2
        %v542 = vmul.f32 %v466, 0.2
        %v543 = vmul.f32 %v535, 0.2
        %v544 = vsel %vm538, %v464, %v541
        %v545 = vsel %vm539, %v466, %v542
        %v546 = vsel %vm540, %v535, %v543
        %547 = vst [vmem:[%s186] sm:$0xff] %v544
        %548 = vst [vmem:[%s186 + $0x8] sm:$0xff] %v545
        %vm549 = vcmask 261120
        %550 = vst.msk [vmem:[%s186 + $0x10] sm:$0xff] %vm549, %v546
        %s551 = sand.u32 %s96, 1
        %s552 = scalar_lea.sflag [#allocation5], %s551
        %s553 = sand.u32 %s96, 1
        %s554 = smul.addr %s553, 24
        %s555 = scalar_lea.vmem [#allocation6], %s554
        // Predicated region
        $region37: #{tpu_custom_call.1} parent=31 // pred_check
          %p556 = pneg %p106
        $region38: #{tpu_custom_call.1} parent=31 // pred_check_branch
          %558 = sbr.rel (%p556) target = $region40
        $region39: #{tpu_custom_call.1} parent=31 // pred_region
          %s560 = ssub.s32 384, 384
          %561 = vsyncadd %s552, %s560
          %s562 = smul.addr %s20, 3
          %s563 = smul.addr %s562, 128
          %s564 = scalar_lea.hbm %s3, %s563
          %s566 = sshll.u32 %s555, 4
          %s567 = int_to_ptr.vmem [resolvable:$true] %s566
          %569 = dma.vmem_to_hbm [thread:$0]  %s567, 384, %s564, %s552
        $region40: #{tpu_custom_call.1} parent=31 // pred_fallthru
          _
      $region32: #{tpu_custom_call.1} parent=5 // pred_fallthru
        _
      %p570 = scmp.le.s32.totalorder 2, %s15
      // Predicated region
      $region41: #{tpu_custom_call.1} parent=5 // pred_check
        %p571 = pneg %p570
      $region42: #{tpu_custom_call.1} parent=5 // pred_check_branch
        %573 = sbr.rel (%p571) target = $region44
      $region43: #{tpu_custom_call.1} parent=5 // pred_region
        %s574 = ssub.s32 %s15, 2
        // Predicated region
        $region45: #{tpu_custom_call.1} parent=43 // pred_check
          %p575 = pneg %p112
        $region46: #{tpu_custom_call.1} parent=43 // pred_check_branch
          %577 = sbr.rel (%p575) target = $region48
        $region47: #{tpu_custom_call.1} parent=43 // pred_region
          %s578 = sand.u32 %s97, 1
          %s579 = scalar_lea.sflag [#allocation5], %s578
          %s580 = sand.u32 %s97, 1
          %s581 = smul.addr %s580, 24
          %s582 = scalar_lea.vmem [#allocation6], %s581
          %583 = dma.done %s579, 384
        $region48: #{tpu_custom_call.1} parent=43 // pred_fallthru
          _
      $region44: #{tpu_custom_call.1} parent=5 // pred_fallthru
        _
    $region6: #{tpu_custom_call.1} parent=1 // loop_footer
      %s19 = sadd.s32 1, %s15
    $region7: #{tpu_custom_call.1} parent=1 // loop_footer_branch
      %14 = sbr.rel target = $region3
    $region8: #{tpu_custom_call.1} parent=1 // loop_exit
      _
    %584 = vsyncpa [#allocation4], 1
    %s585 = scalar_lea.sflag [#allocation4], 1
    %586 = vsyncpa %s585, 1
    %587 = vsyncpa [#allocation5], 1
    %s588 = scalar_lea.sflag [#allocation5], 1
    %589 = vsyncpa %s588, 1

</llo_original>
